<compile_context>
chip_gen: v6e
topology: v6e:2x2x1
jax: 0.10.0
libtpu: 0.0.40
codegen_flags: <defaults>
</compile_context>

<pallas_src>
import jax
import jax.numpy as jnp
from jax import lax
from jax.experimental import pallas as pl
from jax.experimental.pallas import tpu as pltpu


def _round_up(x: int, m: int) -> int:
    return ((x + m - 1) // m) * m


def _projector_kernel(x_ref, w_ref, o_ref):
    """One complete (tm, tn) output tile (full-K contraction, no accumulator).

    x_ref: (tm, K)   activations
    w_ref: (tn, K)   weight in native nn.Linear layout (rows = output features)
    o_ref: (tm, tn)  output tile = x @ w^T  (f32 accumulation on the MXU)
    """
    o_ref[...] = lax.dot_general(
        x_ref[...],
        w_ref[...],
        dimension_numbers=(((1,), (1,)), ((), ())),
        preferred_element_type=jnp.float32,
    ).astype(o_ref.dtype)


def llama4_multimodal_projector(
    image_features: jax.Array,  # [num_tokens, vision_output_dim]       (M, K)
    weight: jax.Array,          # [text_hidden_size, vision_output_dim] (N, K)
    *,
    tm: int | None = None,
    tn: int | None = None,
    vmem_budget_bytes: int | None = None,
) -> jax.Array:                 # [num_tokens, text_hidden_size]        (M, N)
    M, K = image_features.shape
    N, K2 = weight.shape
    assert K == K2, "vision_output_dim mismatch"
    # Real Llama4 dims (e.g. K=4096, N=5120) are multiples of 128.
    assert N % 128 == 0 and K % 128 == 0, (
        "text_hidden_size and vision_output_dim must be multiples of 128"
    )

    x_itemsize = jnp.dtype(image_features.dtype).itemsize
    w_itemsize = jnp.dtype(weight.dtype).itemsize
    o_itemsize = x_itemsize  # output keeps the activation dtype

    # ---- VMEM budget (generation-aware) ------------------------------------
    if vmem_budget_bytes is None:
        try:
            vmem_cap = pltpu.get_tpu_info().vmem_capacity_bytes
        except Exception:
            vmem_cap = 64 << 20  # conservative: v7x per-TensorCore capacity
        vmem_budget_bytes = min((vmem_cap * 3) // 4, 100 << 20)
    # Leave headroom below the limit for compiler-internal scratch.
    tile_budget = int(vmem_budget_bytes * 0.85)

    # Sublane packing: 8 rows for f32, 16 for bf16, 32 for int8.
    sub = max(8, 32 // x_itemsize)

    # ---- tn: largest candidate whose double-buffered full-K weight tile fits
    #          within (at most) half the tile budget --------------------------
    if tn is None:
        tn = 128
        for cand in (512, 256, 128):
            if N % cand == 0 and 2 * cand * K * w_itemsize <= tile_budget // 2:
                tn = cand
                break
    w_tile_bytes = 2 * tn * K * w_itemsize  # double-buffered weight tile

    # ---- tm: as many token rows as fit alongside the weight tile -----------
    if tm is None:
        # Per-row VMEM cost: full-K activation row + output row, double-buffered.
        row_bytes = 2 * (K * x_itemsize + tn * o_itemsize)
        tm_max = (tile_budget - w_tile_bytes) // row_bytes
        tm_max = max(sub, (tm_max // sub) * sub)
        tm_max = min(tm_max, 2048)
        if _round_up(M, sub) <= tm_max:
            tm = _round_up(M, sub)          # single M block: weight + x read once
        else:
            num_i = -(-M // tm_max)          # balance the M blocks
            tm = min(_round_up(-(-M // num_i), sub), tm_max)

    footprint = 2 * tn * K * w_itemsize + 2 * tm * (K * x_itemsize + tn * o_itemsize)
    if footprint > tile_budget:
        # TODO(synk): add a K-split fallback for configs with K too large for
        # a full-K block; real Llama4 configs never hit this.
        raise ValueError(
            f"full-K tiling needs ~{footprint/2**20:.1f} MiB of VMEM, "
            f"budget is {tile_budget/2**20:.1f} MiB"
        )

    # ---- pad the token axis to the tile (cheap; keeps vregs fully packed) --
    m_pad = _round_up(M, tm)
    x = image_features
    if m_pad != M:
        x = jnp.pad(x, ((0, m_pad - M), (0, 0)))

    num_j = N // tn        # weight blocks  (outer grid axis)
    num_i = m_pad // tm    # token blocks   (inner grid axis)
    grid = (num_j, num_i)

    # Actual HBM traffic of this schedule:
    #   weight streamed exactly once; activations re-streamed per weight block
    #   only if there is more than one M block; output written once.
    x_read_bytes = m_pad * K * x_itemsize * (1 if num_i == 1 else num_j)
    cost = pl.CostEstimate(
        flops=2 * m_pad * N * K,
        transcendentals=0,
        bytes_accessed=N * K * w_itemsize + x_read_bytes + m_pad * N * o_itemsize,
    )

    out = pl.pallas_call(
        _projector_kernel,
        out_shape=jax.ShapeDtypeStruct((m_pad, N), image_features.dtype),
        grid_spec=pltpu.PrefetchScalarGridSpec(
            num_scalar_prefetch=0,
            grid=grid,
            in_specs=[
                # activations: (tm, K) block depends only on the inner axis i
                pl.BlockSpec((tm, K), lambda j, i: (i, 0)),
                # weight (native (N, K) layout): (tn, K) block depends only on
                # the OUTER axis j -> revisit-skipped across i, streamed once.
                pl.BlockSpec((tn, K), lambda j, i: (j, 0)),
            ],
            out_specs=pl.BlockSpec((tm, tn), lambda j, i: (i, j)),
        ),
        compiler_params=pltpu.CompilerParams(
            dimension_semantics=("parallel", "parallel"),
            vmem_limit_bytes=int(vmem_budget_bytes),
        ),
        cost_estimate=cost,
    )(x, weight)

    if m_pad != M:
        out = out[:M]
    return out


if __name__ == "__main__":
    # Small synthetic config:
    #   vision_output_dim = 256, text_hidden_size = 128, num image tokens = 8
    num_tokens = 8
    vision_output_dim = 256
    text_hidden_size = 128

    key = jax.random.PRNGKey(0)
    k_x, k_w = jax.random.split(key)

    # bf16 storage (recommended path): weight converted once at "load time",
    # activations arrive bf16 from the vision tower; accumulation is f32.
    image_features = jax.random.normal(
        k_x, (num_tokens, vision_output_dim), dtype=jnp.float32
    ).astype(jnp.bfloat16)
    weight = (
        jax.random.normal(
            k_w, (text_hidden_size, vision_output_dim), dtype=jnp.float32
        )
        * 0.02
    ).astype(jnp.bfloat16)

    out = llama4_multimodal_projector(image_features, weight)
    out = jax.block_until_ready(out)

    # Reference: f32 matmul of the same bf16 values (== PyTorch F.linear).
    ref = image_features.astype(jnp.float32) @ weight.astype(jnp.float32).T
    assert out.shape == (num_tokens, text_hidden_size)
    assert jnp.allclose(out.astype(jnp.float32), ref, atol=2e-2, rtol=2e-2), (
        "mismatch vs reference"
    )

    print("KERNEL_OK")
</pallas_src>

<mosaic_0001>
module attributes {stable_mosaic.version = 11 : i64} {
  func.func @_projector_kernel(%arg0: i32, %arg1: i32, %arg2: memref<16x256xbf16, #tpu.memory_space<vmem>>, %arg3: memref<128x256xbf16, #tpu.memory_space<vmem>>, %arg4: memref<16x128xbf16, #tpu.memory_space<vmem>>) attributes {dimension_semantics = [#tpu.dimension_semantics<parallel>, #tpu.dimension_semantics<parallel>], iteration_bounds = array<i64: 1, 1>, scalar_prefetch = 0 : i64, scratch_operands = 0 : i64, tpu.core_type = #tpu.core_type<tc>, window_params = [{transform_indices = @transform_0, window_bounds = array<i64: 16, 256>}, {transform_indices = @transform_1, window_bounds = array<i64: 128, 256>}, {transform_indices = @transform_2, window_bounds = array<i64: 16, 128>}]} {
    %c0 = arith.constant 0 : index
    %c0_0 = arith.constant 0 : index
    %0 = vector.load %arg2[%c0, %c0_0] : memref<16x256xbf16, #tpu.memory_space<vmem>>, vector<16x256xbf16>
    %c0_1 = arith.constant 0 : index
    %c0_2 = arith.constant 0 : index
    %1 = vector.load %arg3[%c0_1, %c0_2] : memref<128x256xbf16, #tpu.memory_space<vmem>>, vector<128x256xbf16>
    %cst = arith.constant dense<0.000000e+00> : vector<16x128xf32>
    %2 = tpu.matmul %0, %1, %cst {dimension_numbers = #tpu.dot_dimension_numbers<[1], [1], [0], [0], [0, 0, 1, 0], [], []>} : vector<16x256xbf16>, vector<128x256xbf16>, vector<16x128xf32> -> vector<16x128xf32>
    %3 = arith.truncf %2 : vector<16x128xf32> to vector<16x128xbf16>
    %c0_3 = arith.constant 0 : index
    %c0_4 = arith.constant 0 : index
    %4 = vector.load %arg4[%c0_3, %c0_4] : memref<16x128xbf16, #tpu.memory_space<vmem>>, vector<16x128xbf16>
    tpu.vector_store %arg4[%c0_3, %c0_4], %3 {strides = array<i32>} : memref<16x128xbf16, #tpu.memory_space<vmem>>, vector<16x128xbf16>,
    return
  }
  func.func @transform_0(%arg0: i32, %arg1: i32) -> (i32, i32) {
    %c0_i32 = arith.constant 0 : i32
    %c0_i32_0 = arith.constant 0 : i32
    return %arg1, %c0_i32 : i32, i32
  }
  func.func @transform_1(%arg0: i32, %arg1: i32) -> (i32, i32) {
    %c0_i32 = arith.constant 0 : i32
    %c0_i32_0 = arith.constant 0 : i32
    return %arg0, %c0_i32 : i32, i32
  }
  func.func @transform_2(%arg0: i32, %arg1: i32) -> (i32, i32) {
    %c0_i32 = arith.constant 0 : i32
    return %arg1, %arg0 : i32, i32
  }
}

</mosaic_0001>

<llo_original>
// kernel: tpu_custom_call.1
$region0: #{tpu_custom_call.1}
  #allocation0 [shape = 'u32[]', space=smem, size = 0x4, offset = 0x4, fixed_abs, tag = 'smem constant byte address 0x4 - core index']
  #allocation1 [shape = 'u32[144,128]{1,0:T(1,128)}', space=vmem, size = 0x12000, scoped, tag = 'internal scratch']
  %s0 = inlined_call_operand.hbm [shape: bf16[16,256], index: 0, kind: input, shape index: {}]
  %s1 = inlined_call_operand.hbm [shape: bf16[128,256], index: 1, kind: input, shape index: {}]
  %s2 = inlined_call_operand.hbm [shape: bf16[16,128], index: 2, kind: output, shape index: {}]
  %s3 = sld [smem:[#allocation0]]
  $region26: #{tpu_custom_call.1} parent=0
    _
  %s5 = ssub.s32 1, %s3
  %s6 = scalar_select 0, %s5, %s3
  $region1: #{tpu_custom_call.1} parent=0
    #allocation2 [shape = 'u8[8192]{0}', space=vmem, size = 0x2000, scoped, tag = 'input window, operand 0, single buffered']
    #allocation3 [shape = 's32[1]{0}', space=sflag, size = 0x4, scoped, tag = 'scoped memory for tpu_custom_call.1']
    #allocation4 [shape = 's32[1]{0}', space=sflag, size = 0x4, scoped, tag = 'scoped memory for tpu_custom_call.1']
    #allocation5 [shape = 'u8[65536]{0}', space=vmem, size = 0x10000, scoped, tag = 'input window, operand 1, single buffered']
    #allocation6 [shape = 's32[1]{0}', space=sflag, size = 0x4, scoped, tag = 'scoped memory for tpu_custom_call.1']
    #allocation7 [shape = 'u8[4096]{0}', space=vmem, size = 0x1000, scoped, tag = 'output window, operand 0, single buffered']
    %7 = vsyncpa [#allocation3], 0
    %8 = vsyncpa [#allocation6], 0
    %9 = vsyncpa [#allocation4], 0
    // Predicated region
    $region2: #{tpu_custom_call.1} parent=1 // pred_check
      _
    $region3: #{tpu_custom_call.1} parent=1 // pred_check_branch
      %11 = sbr.rel (0) target = $region5
    $region4: #{tpu_custom_call.1} parent=1 // pred_region
      %s13 = ssub.s32 256, 256
      %14 = vsyncadd [#allocation3], %s13
      %s15 = sshll.u32 [#allocation2], 4
      %s16 = int_to_ptr.vmem [resolvable:$true] %s15
      %21 = dma.hbm_to_vmem [thread:$0]  %s0, 256, %s16, [#allocation3], 128, 128, 8
    $region5: #{tpu_custom_call.1} parent=1 // pred_fallthru
      _
    // Predicated region
    $region6: #{tpu_custom_call.1} parent=1 // pred_check
      _
    $region7: #{tpu_custom_call.1} parent=1 // pred_check_branch
      %23 = sbr.rel (0) target = $region9
    $region8: #{tpu_custom_call.1} parent=1 // pred_region
      %s25 = ssub.s32 2048, 2048
      %26 = vsyncadd [#allocation6], %s25
      %s27 = sshll.u32 [#allocation5], 4
      %s28 = int_to_ptr.vmem [resolvable:$true] %s27
      %33 = dma.hbm_to_vmem [thread:$0]  %s1, 2048, %s28, [#allocation6], 128, 128, 8
    $region9: #{tpu_custom_call.1} parent=1 // pred_fallthru
      _
    // Predicated region
    $region10: #{tpu_custom_call.1} parent=1 // pred_check
      _
    $region11: #{tpu_custom_call.1} parent=1 // pred_check_branch
      %35 = sbr.rel (0) target = $region13
    $region12: #{tpu_custom_call.1} parent=1 // pred_region
      %36 = dma.done [#allocation3], 256
    $region13: #{tpu_custom_call.1} parent=1 // pred_fallthru
      _
    // Predicated region
    $region14: #{tpu_custom_call.1} parent=1 // pred_check
      _
    $region15: #{tpu_custom_call.1} parent=1 // pred_check_branch
      %38 = sbr.rel (0) target = $region17
    $region16: #{tpu_custom_call.1} parent=1 // pred_region
      %39 = dma.done [#allocation6], 2048
    $region17: #{tpu_custom_call.1} parent=1 // pred_fallthru
      _
    %v41 = vld [vmem:[#allocation2] sm:$0xff]
    %v42 = vld [vmem:[#allocation2 + $0x8] sm:$0xff]
    %v43 = vld [vmem:[#allocation5] sm:$0xff]
    %v44 = vld [vmem:[#allocation5 + $0x8] sm:$0xff]
    %v45 = vld [vmem:[#allocation5 + $0x10] sm:$0xff]
    %v46 = vld [vmem:[#allocation5 + $0x18] sm:$0xff]
    %v47 = vld [vmem:[#allocation5 + $0x20] sm:$0xff]
    %v48 = vld [vmem:[#allocation5 + $0x28] sm:$0xff]
    %v49 = vld [vmem:[#allocation5 + $0x30] sm:$0xff]
    %v50 = vld [vmem:[#allocation5 + $0x38] sm:$0xff]
    %v51 = vld [vmem:[#allocation5 + $0x40] sm:$0xff]
    %v52 = vld [vmem:[#allocation5 + $0x48] sm:$0xff]
    %v53 = vld [vmem:[#allocation5 + $0x50] sm:$0xff]
    %v54 = vld [vmem:[#allocation5 + $0x58] sm:$0xff]
    %v55 = vld [vmem:[#allocation5 + $0x60] sm:$0xff]
    %v56 = vld [vmem:[#allocation5 + $0x68] sm:$0xff]
    %v57 = vld [vmem:[#allocation5 + $0x70] sm:$0xff]
    %v58 = vld [vmem:[#allocation5 + $0x78] sm:$0xff]
    %v61 = vunpack.c.l.b16 %v41
    %v62 = vunpack.c.h.b16 %v41
    %v63 = vunpack.c.l.b16 %v42
    %v64 = vunpack.c.h.b16 %v42
    %v65 = vpack.c.b16 %v63, %v61
    %v66 = vpack.c.b16 %v64, %v62
    %v85 = vunpack.c.l.b16 %v43
    %v86 = vunpack.c.h.b16 %v43
    %v87 = vunpack.c.l.b16 %v44
    %v88 = vunpack.c.h.b16 %v44
    %v89 = vunpack.c.l.b16 %v45
    %v90 = vunpack.c.h.b16 %v45
    %v91 = vunpack.c.l.b16 %v46
    %v92 = vunpack.c.h.b16 %v46
    %v93 = vunpack.c.l.b16 %v47
    %v94 = vunpack.c.h.b16 %v47
    %v95 = vunpack.c.l.b16 %v48
    %v96 = vunpack.c.h.b16 %v48
    %v97 = vunpack.c.l.b16 %v49
    %v98 = vunpack.c.h.b16 %v49
    %v99 = vunpack.c.l.b16 %v50
    %v100 = vunpack.c.h.b16 %v50
    %v101 = vunpack.c.l.b16 %v51
    %v102 = vunpack.c.h.b16 %v51
    %v103 = vunpack.c.l.b16 %v52
    %v104 = vunpack.c.h.b16 %v52
    %v105 = vunpack.c.l.b16 %v53
    %v106 = vunpack.c.h.b16 %v53
    %v107 = vunpack.c.l.b16 %v54
    %v108 = vunpack.c.h.b16 %v54
    %v109 = vunpack.c.l.b16 %v55
    %v110 = vunpack.c.h.b16 %v55
    %v111 = vunpack.c.l.b16 %v56
    %v112 = vunpack.c.h.b16 %v56
    %v113 = vunpack.c.l.b16 %v57
    %v114 = vunpack.c.h.b16 %v57
    %v115 = vunpack.c.l.b16 %v58
    %v116 = vunpack.c.h.b16 %v58
    %v117 = vpack.c.b16 %v87, %v85
    %v118 = vpack.c.b16 %v88, %v86
    %v119 = vpack.c.b16 %v91, %v89
    %v120 = vpack.c.b16 %v92, %v90
    %v121 = vpack.c.b16 %v95, %v93
    %v122 = vpack.c.b16 %v96, %v94
    %v123 = vpack.c.b16 %v99, %v97
    %v124 = vpack.c.b16 %v100, %v98
    %v125 = vpack.c.b16 %v103, %v101
    %v126 = vpack.c.b16 %v104, %v102
    %v127 = vpack.c.b16 %v107, %v105
    %v128 = vpack.c.b16 %v108, %v106
    %v129 = vpack.c.b16 %v111, %v109
    %v130 = vpack.c.b16 %v112, %v110
    %v131 = vpack.c.b16 %v115, %v113
    %v132 = vpack.c.b16 %v116, %v114
    %149 = vmatprep.subr.bf16.mxu0 %v132
    %150 = vmatpush1.bf16.xpose.msra.mxu0 %v131
    %151 = vmatprep.subr.bf16.mxu0 %v130
    %152 = vmatpush1.bf16.xpose.msra.mxu0 %v129
    %153 = vmatprep.subr.bf16.mxu0 %v128
    %154 = vmatpush1.bf16.xpose.msra.mxu0 %v127
    %155 = vmatprep.subr.bf16.mxu0 %v126
    %156 = vmatpush1.bf16.xpose.msra.mxu0 %v125
    %157 = vmatprep.subr.bf16.mxu0 %v124
    %158 = vmatpush1.bf16.xpose.msra.mxu0 %v123
    %159 = vmatprep.subr.bf16.mxu0 %v122
    %160 = vmatpush1.bf16.xpose.msra.mxu0 %v121
    %161 = vmatprep.subr.bf16.mxu0 %v120
    %162 = vmatpush1.bf16.xpose.msra.mxu0 %v119
    %163 = vmatprep.subr.bf16.mxu0 %v118
    %164 = vmatpush1.bf16.xpose.msra.mxu0 %v117
    %165 = vmatprep.subr.bf16.mxu0 0
    %166 = vmatpush2.bf16.xpose.msra.mxu0 0
    %167 = vmatprep.subr.bf16.mxu0 0
    %168 = vmatpush2.bf16.xpose.msra.mxu0 0
    %169 = vmatprep.subr.bf16.mxu0 0
    %170 = vmatpush2.bf16.xpose.msra.mxu0 0
    %171 = vmatprep.subr.bf16.mxu0 0
    %172 = vmatpush2.bf16.xpose.msra.mxu0 0
    %173 = vmatprep.subr.bf16.mxu0 0
    %174 = vmatpush2.bf16.xpose.msra.mxu0 0
    %175 = vmatprep.subr.bf16.mxu0 0
    %176 = vmatpush2.bf16.xpose.msra.mxu0 0
    %177 = vmatprep.subr.bf16.mxu0 0
    %178 = vmatpush2.bf16.xpose.msra.mxu0 0
    %179 = vmatprep.subr.bf16.mxu0 0
    %180 = vmatpush2.bf16.xpose.msra.mxu0 0
    %181 = vmatprep.mubr.bf16.mxu0 %v66
    %182 = vmatmul.mubr.bf16.gmra.mxu0 %v65
    %v183 = vpop.f32.mrf.mxu0
    %v184 = vadd.f32 0.0, %v183
    %v185 = vpop.f32.mrf.mxu0
    %v186 = vpop.f32.mrf.mxu0
    %v187 = vadd.f32 0.0, %v186
    %v188 = vpop.f32.mrf.mxu0
    %189 = vdwg.mxu0
    %v190 = vpack.c.bf16 %v187, %v184
    %v192 = vunpack.c.l.b16 %v190
    %v193 = vunpack.c.h.b16 %v190
    %v194 = vpack.c.b16 %v192, %v192
    %v195 = vpack.c.b16 %v193, %v193
    %198 = vst [vmem:[#allocation7] sm:$0xf] %v194
    %199 = vst [vmem:[#allocation7 + $0x4] sm:$0xf] %v195
    // Predicated region
    $region18: #{tpu_custom_call.1} parent=1 // pred_check
      _
    $region19: #{tpu_custom_call.1} parent=1 // pred_check_branch
      %201 = sbr.rel (0) target = $region21
    $region20: #{tpu_custom_call.1} parent=1 // pred_region
      %s203 = ssub.s32 128, 128
      %204 = vsyncadd [#allocation4], %s203
      %s205 = sshll.u32 [#allocation7], 4
      %s206 = int_to_ptr.vmem [resolvable:$true] %s205
      %211 = dma.vmem_to_hbm [thread:$0]  %s206, 128, %s2, [#allocation4], 64, 64, 4
    $region21: #{tpu_custom_call.1} parent=1 // pred_fallthru
      _
    // Predicated region
    $region22: #{tpu_custom_call.1} parent=1 // pred_check
      _
    $region23: #{tpu_custom_call.1} parent=1 // pred_check_branch
      %213 = sbr.rel (0) target = $region25
    $region24: #{tpu_custom_call.1} parent=1 // pred_region
      %214 = dma.done [#allocation4], 128
    $region25: #{tpu_custom_call.1} parent=1 // pred_fallthru
      _
    %215 = vsyncpa [#allocation3], 1
    %216 = vsyncpa [#allocation6], 1
    %217 = vsyncpa [#allocation4], 1

</llo_original>
